<compile_context>
chip_gen: v6e
topology: v6e:2x2x1
jax: 0.10.0
libtpu: 0.0.40
codegen_flags: <defaults>
</compile_context>

<pallas_src>
import numpy as np
import jax
import jax.numpy as jnp
from jax.experimental import pallas as pl
from jax.experimental.pallas import tpu as pltpu

# ----------------------------- problem sizes --------------------------------
BATCH = 8         # B
STATE = 4         # cartpole state dim
LATENT = 2        # autoencoder latent dim (z)
CONTROL = 1       # control input dim (u)  — must stay 1 (u*Wf1u == u@Wf1u)
HIDDEN = 32       # MLP hidden width (shared by ae.encode / ae.decode / dynamics)

_F32 = jnp.float32
_REP = 8          # bias rows replicated to one f32 sublane tile

# -------------------- packed, pre-fused parameter slab -----------------------
# Each entry starts on an 8-row (sublane-tile) boundary; 128 lanes wide.
_PARAM_LAYOUT = (
    ("w1", (LATENT, HIDDEN)),        # Wd1
    ("b1", (_REP, HIDDEN)),          # bd1                          (replicated)
    ("a2", (HIDDEN, 2 * HIDDEN)),    # [Wd2@We1 | Wd2@Wf1x]
    ("u2", (_REP, 2 * HIDDEN)),      # [0 | Wf1u]                   (replicated)
    ("c2", (_REP, 2 * HIDDEN)),      # [bd2@We1+be1 | bd2@Wf1x+bf1] (replicated)
    ("a3", (2 * HIDDEN, HIDDEN)),    # [[0], [Wf2@We1]]
    ("c3", (_REP, HIDDEN)),          # bf2@We1                      (replicated)
    ("w4", (HIDDEN, LATENT)),        # We2 (lanes >= LATENT stay zero)
)
_SHAPES = dict(_PARAM_LAYOUT)
_ROW = {}
_r = 0
for _name, (_rows, _cols) in _PARAM_LAYOUT:
    _ROW[_name] = _r
    _r += -(-_rows // 8) * 8        # round each block up to a multiple of 8 rows
SLAB_ROWS = _r                      # = 168
SLAB_LANES = 128


def pack_params(params):
    """Pre-fuse and pack all weights into one (SLAB_ROWS, 128) f32 slab.

    Done ONCE (outside the kernel); reuse the slab across every call — the
    fusions below remove two matmuls and all x/f materialization from the
    in-kernel critical path.
    """
    assert CONTROL == 1, "kernel relies on u * Wf1u == u @ Wf1u (CONTROL == 1)"
    g = lambda n: params[n].astype(_F32)
    wd1, bd1 = g("wd1"), g("bd1").reshape(1, HIDDEN)
    wd2, bd2 = g("wd2"), g("bd2").reshape(1, STATE)
    we1, be1 = g("we1"), g("be1").reshape(1, HIDDEN)
    we2 = g("we2")
    wf1x = g("wf1x")
    wf1u = g("wf1u").reshape(CONTROL, HIDDEN)
    bf1 = g("bf1").reshape(1, HIDDEN)
    wf2, bf2 = g("wf2"), g("bf2").reshape(1, STATE)

    a_enc, c_enc = wd2 @ we1, bd2 @ we1 + be1       # encoder preact, decode folded in
    a_dyn, c_dyn = wd2 @ wf1x, bd2 @ wf1x + bf1     # dynamics preact, decode folded in
    a_tan, c_tan = wf2 @ we1, bf2 @ we1             # tangent (f @ We1), f folded in

    entries = {
        "w1": wd1,
        "b1": jnp.tile(bd1, (_REP, 1)),
        "a2": jnp.concatenate([a_enc, a_dyn], axis=1),
        "u2": jnp.tile(jnp.concatenate(
            [jnp.zeros((1, HIDDEN), _F32), wf1u], axis=1), (_REP, 1)),
        "c2": jnp.tile(jnp.concatenate([c_enc, c_dyn], axis=1), (_REP, 1)),
        "a3": jnp.concatenate([jnp.zeros((HIDDEN, HIDDEN), _F32), a_tan], axis=0),
        "c3": jnp.tile(c_tan, (_REP, 1)),
        "w4": we2,
    }
    slab = jnp.zeros((SLAB_ROWS, SLAB_LANES), dtype=_F32)
    for name, (rows, cols) in _PARAM_LAYOUT:
        slab = slab.at[_ROW[name]:_ROW[name] + rows, :cols].set(entries[name])
    return slab


def _view(p_ref, name):
    """Static (zero-cost-indexed, tile-aligned) view of one slab entry."""
    rows, cols = _SHAPES[name]
    r = _ROW[name]
    return p_ref[r:r + rows, :cols]


# ------------------------------ Pallas kernel --------------------------------
def encoded_dynamics_kernel(z_ref, u_ref, p_ref, out_ref):
    b = z_ref.shape[0]

    def bias(name):                       # replicated rows: plain vreg add at B == 8
        v = _view(p_ref, name)
        return v if b == _REP else v[:1, :]

    z = z_ref[...]                        # (B, LATENT)
    u = u_ref[...]                        # (B, 1)

    # Stage 1: hd = tanh(z @ Wd1 + bd1)                                -- MXU #1
    hd = jnp.tanh(jnp.dot(z, _view(p_ref, "w1"),
                          preferred_element_type=jnp.float32) + bias("b1"))

    # u @ Wf1u, landed only on the dynamics (right) half of the 64-lane
    # stage-2 preactivation.  Depends only on u -> overlaps the MXU chain.
    u_term = u * bias("u2")               # (B, 64), left 32 lanes are zero

    # Stage 2: one shared-LHS (B,32)@(32,64) matmul + one 64-lane tanh -- MXU #2
    #   left  32 lanes: h1 = x @ We1  + be1            (encoder primal preact)
    #   right 32 lanes:      x @ Wf1x + u@Wf1u + bf1   (dynamics hidden preact)
    t = jnp.tanh(jnp.dot(hd, _view(p_ref, "a2"),
                         preferred_element_type=jnp.float32) + u_term + bias("c2"))

    gate = 1.0 - t[:, :HIDDEN] * t[:, :HIDDEN]   # dtanh/dh1 (VPU, overlaps MXU #3)

    # Stage 3: tangent preact  f @ We1 = hf @ (Wf2@We1) + bf2@We1      -- MXU #3
    # a3's top 32 rows are zero, so the full 64-lane t feeds in directly
    # (no lane shift needed to extract hf = t[:, 32:]).
    pre3 = jnp.dot(t, _view(p_ref, "a3"),
                   preferred_element_type=jnp.float32) + bias("c3")

    # Stage 4: out = (gate * (f @ We1)) @ We2                          -- MXU #4
    # Full 128-lane RHS (zeros past column LATENT); slice before the store so
    # the kernel emits (B, LATENT) directly and the wrapper needs no slice op.
    out128 = jnp.dot(gate * pre3, p_ref[_ROW["w4"]:_ROW["w4"] + HIDDEN, :],
                     preferred_element_type=jnp.float32)
    out_ref[...] = out128[:, :LATENT].astype(out_ref.dtype)


# ------------------------------ JAX wrapper -----------------------------------
def encoded_dynamics(z, u, param_slab):
    """z: (B, LATENT), u: (B, CONTROL), param_slab: pack_params(...) output.

    No wrapper-side concat/slice: z and u go in as separate VMEM operands and
    the kernel emits (B, LATENT) directly.  If this runs inside a rollout/MPC
    loop, batch as many independent (z, u) samples per call as possible —
    fixed dispatch cost dominates at this size.  (On v7x, only once the batch
    is large would a grid over batch chunks with dimension_semantics=
    ("parallel",) pay off; at B=8 a grid only adds pipeline overhead.)
    """
    b = z.shape[0]
    vmem = pltpu.MemorySpace.VMEM
    return pl.pallas_call(
        encoded_dynamics_kernel,
        out_shape=jax.ShapeDtypeStruct((b, LATENT), _F32),
        in_specs=[pl.BlockSpec(memory_space=vmem),
                  pl.BlockSpec(memory_space=vmem),
                  pl.BlockSpec(memory_space=vmem)],
        out_specs=pl.BlockSpec(memory_space=vmem),
    )(z.astype(_F32), u.astype(_F32), param_slab)


encoded_dynamics_jit = jax.jit(encoded_dynamics)


# --------------------------- pure-JAX reference -------------------------------
def _encode(x, p):        # x: (STATE,)
    h = jnp.tanh(x @ p["we1"] + p["be1"][0])
    return h @ p["we2"] + p["be2"][0]


def _decode(z, p):        # z: (B, LATENT)
    h = jnp.tanh(z @ p["wd1"] + p["bd1"])
    return h @ p["wd2"] + p["bd2"]


def _dynamics(x, u, p):   # x: (B, STATE), u: (B, CONTROL)
    h = jnp.tanh(x @ p["wf1x"] + u @ p["wf1u"] + p["bf1"])
    return h @ p["wf2"] + p["bf2"]


def reference(z, u, p):
    x = _decode(z, p)
    dzdx = jax.vmap(jax.jacrev(lambda xx: _encode(xx, p)))(x)   # (B, LATENT, STATE)
    f = _dynamics(x, u, p)                                      # (B, STATE)
    return jnp.einsum("bls,bs->bl", dzdx, f)                    # (B, LATENT)


# ---------------------------------- main ---------------------------------------
def _init_params(key):
    ks = jax.random.split(key, 13)

    def w(k, shape, scale=0.3):
        return (scale * jax.random.normal(k, shape)).astype(_F32)

    return {
        # decoder: LATENT -> HIDDEN -> STATE
        "wd1": w(ks[0], (LATENT, HIDDEN)), "bd1": w(ks[1], (1, HIDDEN), 0.1),
        "wd2": w(ks[2], (HIDDEN, STATE)), "bd2": w(ks[3], (1, STATE), 0.1),
        # encoder: STATE -> HIDDEN -> LATENT
        "we1": w(ks[4], (STATE, HIDDEN)), "be1": w(ks[5], (1, HIDDEN), 0.1),
        "we2": w(ks[6], (HIDDEN, LATENT)), "be2": w(ks[7], (1, LATENT), 0.1),
        # dynamics: [STATE | CONTROL] -> HIDDEN -> STATE
        "wf1x": w(ks[8], (STATE, HIDDEN)),
        "wf1u": w(ks[9], (CONTROL, HIDDEN)),
        "bf1": w(ks[10], (1, HIDDEN), 0.1),
        "wf2": w(ks[11], (HIDDEN, STATE)), "bf2": w(ks[12], (1, STATE), 0.1),
    }


if __name__ == "__main__":
    key = jax.random.PRNGKey(0)
    k_p, k_z, k_u = jax.random.split(key, 3)
    params = _init_params(k_p)
    z = jax.random.normal(k_z, (BATCH, LATENT), dtype=_F32)
    u = jax.random.normal(k_u, (BATCH, CONTROL), dtype=_F32)

    # Pre-fuse + pack the weights once; reuse the slab across every call.
    slab = jax.block_until_ready(pack_params(params))

    out = jax.block_until_ready(encoded_dynamics_jit(z, u, slab))
    ref = jax.block_until_ready(reference(z, u, params))
    np.testing.assert_allclose(np.asarray(out), np.asarray(ref),
                               rtol=5e-4, atol=5e-5)

    print("KERNEL_OK")
</pallas_src>

<mosaic_0001>
module attributes {stable_mosaic.version = 11 : i64} {
  func.func @encoded_dynamics_kernel(%arg0: memref<8x2xf32, #tpu.memory_space<vmem>>, %arg1: memref<8x1xf32, #tpu.memory_space<vmem>>, %arg2: memref<168x128xf32, #tpu.memory_space<vmem>>, %arg3: memref<8x2xf32, #tpu.memory_space<vmem>>) attributes {dimension_semantics = [], scalar_prefetch = 0 : i64, scratch_operands = 0 : i64, tpu.core_type = #tpu.core_type<tc>} {
    %c0 = arith.constant 0 : index
    %c0_0 = arith.constant 0 : index
    %0 = vector.load %arg0[%c0, %c0_0] : memref<8x2xf32, #tpu.memory_space<vmem>>, vector<8x2xf32>
    %c0_1 = arith.constant 0 : index
    %c0_2 = arith.constant 0 : index
    %1 = vector.load %arg1[%c0_1, %c0_2] : memref<8x1xf32, #tpu.memory_space<vmem>>, vector<8x1xf32>
    %c0_3 = arith.constant 0 : index
    %c0_4 = arith.constant 0 : index
    %2 = vector.load %arg2[%c0_3, %c0_4] : memref<168x128xf32, #tpu.memory_space<vmem>>, vector<2x32xf32>
    %cst = arith.constant dense<0.000000e+00> : vector<8x32xf32>
    %3 = tpu.matmul %0, %2, %cst {dimension_numbers = #tpu.dot_dimension_numbers<[1], [0], [0], [1], [0, 0, 1, 1], [], []>} : vector<8x2xf32>, vector<2x32xf32>, vector<8x32xf32> -> vector<8x32xf32>
    %c8 = arith.constant 8 : index
    %c0_5 = arith.constant 0 : index
    %4 = vector.load %arg2[%c8, %c0_5] : memref<168x128xf32, #tpu.memory_space<vmem>>, vector<8x32xf32>
    %5 = arith.addf %3, %4 : vector<8x32xf32>
    %6 = math.tanh %5 : vector<8x32xf32>
    %c48 = arith.constant 48 : index
    %c0_6 = arith.constant 0 : index
    %7 = vector.load %arg2[%c48, %c0_6] : memref<168x128xf32, #tpu.memory_space<vmem>>, vector<8x64xf32>
    %8 = vector.broadcast %1 : vector<8x1xf32> to vector<8x64xf32>
    %9 = arith.mulf %8, %7 : vector<8x64xf32>
    %c16 = arith.constant 16 : index
    %c0_7 = arith.constant 0 : index
    %10 = vector.load %arg2[%c16, %c0_7] : memref<168x128xf32, #tpu.memory_space<vmem>>, vector<32x64xf32>
    %cst_8 = arith.constant dense<0.000000e+00> : vector<8x64xf32>
    %11 = tpu.matmul %6, %10, %cst_8 {dimension_numbers = #tpu.dot_dimension_numbers<[1], [0], [0], [1], [0, 0, 1, 1], [], []>} : vector<8x32xf32>, vector<32x64xf32>, vector<8x64xf32> -> vector<8x64xf32>
    %12 = arith.addf %11, %9 : vector<8x64xf32>
    %c56 = arith.constant 56 : index
    %c0_9 = arith.constant 0 : index
    %13 = vector.load %arg2[%c56, %c0_9] : memref<168x128xf32, #tpu.memory_space<vmem>>, vector<8x64xf32>
    %14 = arith.addf %12, %13 : vector<8x64xf32>
    %15 = math.tanh %14 : vector<8x64xf32>
    %16 = vector.extract_strided_slice %15 {offsets = [0, 0], sizes = [8, 32], strides = [1, 1]} : vector<8x64xf32> to vector<8x32xf32>
    %17 = vector.extract_strided_slice %15 {offsets = [0, 0], sizes = [8, 32], strides = [1, 1]} : vector<8x64xf32> to vector<8x32xf32>
    %18 = arith.mulf %16, %17 : vector<8x32xf32>
    %cst_10 = arith.constant 1.000000e+00 : f32
    %19 = vector.broadcast %cst_10 : f32 to vector<8x32xf32>
    %20 = arith.subf %19, %18 : vector<8x32xf32>
    %c64 = arith.constant 64 : index
    %c0_11 = arith.constant 0 : index
    %21 = vector.load %arg2[%c64, %c0_11] : memref<168x128xf32, #tpu.memory_space<vmem>>, vector<64x32xf32>
    %cst_12 = arith.constant dense<0.000000e+00> : vector<8x32xf32>
    %22 = tpu.matmul %15, %21, %cst_12 {dimension_numbers = #tpu.dot_dimension_numbers<[1], [0], [0], [1], [0, 0, 1, 1], [], []>} : vector<8x64xf32>, vector<64x32xf32>, vector<8x32xf32> -> vector<8x32xf32>
    %c128 = arith.constant 128 : index
    %c0_13 = arith.constant 0 : index
    %23 = vector.load %arg2[%c128, %c0_13] : memref<168x128xf32, #tpu.memory_space<vmem>>, vector<8x32xf32>
    %24 = arith.addf %22, %23 : vector<8x32xf32>
    %25 = arith.mulf %20, %24 : vector<8x32xf32>
    %c136 = arith.constant 136 : index
    %c0_14 = arith.constant 0 : index
    %26 = vector.load %arg2[%c136, %c0_14] : memref<168x128xf32, #tpu.memory_space<vmem>>, vector<32x128xf32>
    %cst_15 = arith.constant dense<0.000000e+00> : vector<8x128xf32>
    %27 = tpu.matmul %25, %26, %cst_15 {dimension_numbers = #tpu.dot_dimension_numbers<[1], [0], [0], [1], [0, 0, 1, 1], [], []>} : vector<8x32xf32>, vector<32x128xf32>, vector<8x128xf32> -> vector<8x128xf32>
    %28 = vector.extract_strided_slice %27 {offsets = [0, 0], sizes = [8, 2], strides = [1, 1]} : vector<8x128xf32> to vector<8x2xf32>
    %c0_16 = arith.constant 0 : index
    %c0_17 = arith.constant 0 : index
    %29 = vector.load %arg3[%c0_16, %c0_17] : memref<8x2xf32, #tpu.memory_space<vmem>>, vector<8x2xf32>
    tpu.vector_store %arg3[%c0_16, %c0_17], %28 {strides = array<i32>} : memref<8x2xf32, #tpu.memory_space<vmem>>, vector<8x2xf32>,
    return
  }
}

</mosaic_0001>

<llo_original>
// kernel: encoded_dynamics.1
$region0: #{encoded_dynamics.1}
  #allocation0 [shape = 'u32[]', space=smem, size = 0x4, offset = 0x4, fixed_abs, tag = 'smem constant byte address 0x4 - core index']
  #allocation1 [shape = 'u32[144,128]{1,0:T(1,128)}', space=vmem, size = 0x12000, scoped, tag = 'internal scratch']
  %s0 = inlined_call_operand.vmem [shape: f32[8,2], index: 0, kind: input, shape index: {}]
  %s1 = inlined_call_operand.vmem [shape: f32[8,1], index: 1, kind: input, shape index: {}]
  %s2 = inlined_call_operand.hbm [shape: f32[168,128], index: 2, kind: input, shape index: {}]
  %s3 = inlined_call_operand.vmem [shape: f32[8,2], index: 3, kind: output, shape index: {}]
  %s4 = sld [smem:[#allocation0]]
  $region26: #{encoded_dynamics.1} parent=0
    _
  %s6 = ssub.s32 1, %s4
  %s7 = scalar_select 0, %s6, %s4
  $region1: #{encoded_dynamics.1} parent=0
    #allocation2 [shape = 'u8[86016]{0}', space=vmem, size = 0x15000, scoped, tag = 'input window, operand 2, single buffered']
    #allocation3 [shape = 's32[1]{0}', space=sflag, size = 0x4, scoped, tag = 'scoped memory for encoded_dynamics.1']
    %8 = vsyncpa [#allocation3], 0
    // Predicated region
    $region2: #{encoded_dynamics.1} parent=1 // pred_check
      _
    $region3: #{encoded_dynamics.1} parent=1 // pred_check_branch
      %10 = sbr.rel (0) target = $region5
    $region4: #{encoded_dynamics.1} parent=1 // pred_region
      _
    $region5: #{encoded_dynamics.1} parent=1 // pred_fallthru
      _
    // Predicated region
    $region6: #{encoded_dynamics.1} parent=1 // pred_check
      _
    $region7: #{encoded_dynamics.1} parent=1 // pred_check_branch
      %12 = sbr.rel (0) target = $region9
    $region8: #{encoded_dynamics.1} parent=1 // pred_region
      _
    $region9: #{encoded_dynamics.1} parent=1 // pred_fallthru
      _
    // Predicated region
    $region10: #{encoded_dynamics.1} parent=1 // pred_check
      _
    $region11: #{encoded_dynamics.1} parent=1 // pred_check_branch
      %14 = sbr.rel (0) target = $region13
    $region12: #{encoded_dynamics.1} parent=1 // pred_region
      %s16 = ssub.s32 2688, 2688
      %17 = vsyncadd [#allocation3], %s16
      %s18 = sshll.u32 [#allocation2], 4
      %s19 = int_to_ptr.vmem [resolvable:$true] %s18
      %24 = dma.hbm_to_vmem [thread:$0]  %s2, 2688, %s19, [#allocation3], 128, 128, 8
    $region13: #{encoded_dynamics.1} parent=1 // pred_fallthru
      _
    // Predicated region
    $region14: #{encoded_dynamics.1} parent=1 // pred_check
      _
    $region15: #{encoded_dynamics.1} parent=1 // pred_check_branch
      %26 = sbr.rel (0) target = $region17
    $region16: #{encoded_dynamics.1} parent=1 // pred_region
      %27 = dma.done [#allocation3], 2688
    $region17: #{encoded_dynamics.1} parent=1 // pred_fallthru
      _
    %v28 = vld [vmem:[%s0] sm:$0xff]
    %v29 = vld [vmem:[%s1] sm:$0xff]
    %v30 = vld [vmem:[#allocation2] sm:$0x3]
    %v31 = vld [vmem:[#allocation2 + $0x8] sm:$0xff]
    %vm32 = vcmask 15360
    %v34 = vsel %vm32, %v28, 0
    %vm36 = vcmask 1041408
    %v38 = vsel %vm36, %v30, 0
    %40 = vmatprep.subr.mxu0 0.0
    %41 = vmatpush1.msra.mxu0 0.0
    %42 = vmatprep.subr.mxu0 0.0
    %43 = vmatpush1.msra.mxu0 0.0
    %44 = vmatprep.subr.mxu0 0.0
    %45 = vmatpush1.msra.mxu0 0.0
    %46 = vmatprep.subr.mxu0 0.0
    %47 = vmatpush1.msra.mxu0 0.0
    %48 = vmatprep.subr.mxu0 0.0
    %49 = vmatpush1.msra.mxu0 0.0
    %50 = vmatprep.subr.mxu0 0.0
    %51 = vmatpush1.msra.mxu0 0.0
    %52 = vmatprep.subr.mxu0 0.0
    %53 = vmatpush1.msra.mxu0 0.0
    %54 = vmatprep.subr.mxu0 0.0
    %55 = vmatpush1.msra.mxu0 0.0
    %56 = vmatprep.subr.mxu0 0.0
    %57 = vmatpush1.msra.mxu0 0.0
    %58 = vmatprep.subr.mxu0 0.0
    %59 = vmatpush1.msra.mxu0 0.0
    %60 = vmatprep.subr.mxu0 0.0
    %61 = vmatpush1.msra.mxu0 0.0
    %62 = vmatprep.subr.mxu0 0.0
    %63 = vmatpush1.msra.mxu0 0.0
    %64 = vmatprep.subr.mxu0 0.0
    %65 = vmatpush1.msra.mxu0 0.0
    %66 = vmatprep.subr.mxu0 0.0
    %67 = vmatpush1.msra.mxu0 0.0
    %68 = vmatprep.subr.mxu0 0.0
    %69 = vmatpush1.msra.mxu0 0.0
    %70 = vmatprep.subr.mxu0 0.0
    %71 = vmatpush1.msra.mxu0 %v38
    %72 = vmatprep.subr.mxu0 0.0
    %73 = vmatpush2.msra.mxu0 0.0
    %74 = vmatprep.subr.mxu0 0.0
    %75 = vmatpush2.msra.mxu0 0.0
    %76 = vmatprep.subr.mxu0 0.0
    %77 = vmatpush2.msra.mxu0 0.0
    %78 = vmatprep.subr.mxu0 0.0
    %79 = vmatpush2.msra.mxu0 0.0
    %80 = vmatprep.subr.mxu0 0.0
    %81 = vmatpush2.msra.mxu0 0.0
    %82 = vmatprep.subr.mxu0 0.0
    %83 = vmatpush2.msra.mxu0 0.0
    %84 = vmatprep.subr.mxu0 0.0
    %85 = vmatpush2.msra.mxu0 0.0
    %86 = vmatprep.subr.mxu0 0.0
    %87 = vmatpush2.msra.mxu0 0.0
    %88 = vmatprep.subr.mxu0 0.0
    %89 = vmatpush2.msra.mxu0 0.0
    %90 = vmatprep.subr.mxu0 0.0
    %91 = vmatpush2.msra.mxu0 0.0
    %92 = vmatprep.subr.mxu0 0.0
    %93 = vmatpush2.msra.mxu0 0.0
    %94 = vmatprep.subr.mxu0 0.0
    %95 = vmatpush2.msra.mxu0 0.0
    %96 = vmatprep.subr.mxu0 0.0
    %97 = vmatpush2.msra.mxu0 0.0
    %98 = vmatprep.subr.mxu0 0.0
    %99 = vmatpush2.msra.mxu0 0.0
    %100 = vmatprep.subr.mxu0 0.0
    %101 = vmatpush2.msra.mxu0 0.0
    %102 = vmatprep.subr.mxu0 0.0
    %103 = vmatpush2.msra.mxu0 0.0
    %104 = vmatprep.mubr.f32.mxu0 0.0
    %105 = vmatmul.mubr.f32.gmra.mxu0 %v34
    %v106 = vpop.f32.mrf.mxu0
    %v107 = vadd.f32 %v31, %v106
    %v108 = vpop.f32.mrf.mxu0
    %109 = vdwg.mxu0
    %v110 = vtanh.pop %v107
    %v111 = vld [vmem:[#allocation2 + $0x30] sm:$0xff]
    %113 = vset.pattern.permute.xlu0 0
    %114 = vperm.xlu0 %113, %v29
    %v115 = vpop.permute.xlu0 %114
    %v117 = vmul.f32 %v115, %v111
    %v118 = vld [vmem:[#allocation2 + $0x10] sm:$0xff]
    %v119 = vld [vmem:[#allocation2 + $0x18] sm:$0xff]
    %v120 = vld [vmem:[#allocation2 + $0x20] sm:$0xff]
    %v121 = vld [vmem:[#allocation2 + $0x28] sm:$0xff]
    %vm122 = vcmask 261120
    %v124 = vsel %vm122, %v110, 0
    %126 = vmatprep.subr.mxu0 0.0
    %127 = vmatpush1.msra.mxu0 0.0
    %128 = vmatprep.subr.mxu0 0.0
    %129 = vmatpush1.msra.mxu0 0.0
    %130 = vmatprep.subr.mxu0 0.0
    %131 = vmatpush1.msra.mxu0 0.0
    %132 = vmatprep.subr.mxu0 0.0
    %133 = vmatpush1.msra.mxu0 0.0
    %134 = vmatprep.subr.mxu0 0.0
    %135 = vmatpush1.msra.mxu0 0.0
    %136 = vmatprep.subr.mxu0 0.0
    %137 = vmatpush1.msra.mxu0 0.0
    %138 = vmatprep.subr.mxu0 0.0
    %139 = vmatpush1.msra.mxu0 0.0
    %140 = vmatprep.subr.mxu0 0.0
    %141 = vmatpush1.msra.mxu0 0.0
    %142 = vmatprep.subr.mxu0 0.0
    %143 = vmatpush1.msra.mxu0 0.0
    %144 = vmatprep.subr.mxu0 0.0
    %145 = vmatpush1.msra.mxu0 0.0
    %146 = vmatprep.subr.mxu0 0.0
    %147 = vmatpush1.msra.mxu0 0.0
    %148 = vmatprep.subr.mxu0 0.0
    %149 = vmatpush1.msra.mxu0 0.0
    %150 = vmatprep.subr.mxu0 0.0
    %151 = vmatpush1.msra.mxu0 %v121
    %152 = vmatprep.subr.mxu0 0.0
    %153 = vmatpush1.msra.mxu0 %v120
    %154 = vmatprep.subr.mxu0 0.0
    %155 = vmatpush1.msra.mxu0 %v119
    %156 = vmatprep.subr.mxu0 0.0
    %157 = vmatpush1.msra.mxu0 %v118
    %158 = vmatprep.subr.mxu0 0.0
    %159 = vmatpush2.msra.mxu0 0.0
    %160 = vmatprep.subr.mxu0 0.0
    %161 = vmatpush2.msra.mxu0 0.0
    %162 = vmatprep.subr.mxu0 0.0
    %163 = vmatpush2.msra.mxu0 0.0
    %164 = vmatprep.subr.mxu0 0.0
    %165 = vmatpush2.msra.mxu0 0.0
    %166 = vmatprep.subr.mxu0 0.0
    %167 = vmatpush2.msra.mxu0 0.0
    %168 = vmatprep.subr.mxu0 0.0
    %169 = vmatpush2.msra.mxu0 0.0
    %170 = vmatprep.subr.mxu0 0.0
    %171 = vmatpush2.msra.mxu0 0.0
    %172 = vmatprep.subr.mxu0 0.0
    %173 = vmatpush2.msra.mxu0 0.0
    %174 = vmatprep.subr.mxu0 0.0
    %175 = vmatpush2.msra.mxu0 0.0
    %176 = vmatprep.subr.mxu0 0.0
    %177 = vmatpush2.msra.mxu0 0.0
    %178 = vmatprep.subr.mxu0 0.0
    %179 = vmatpush2.msra.mxu0 0.0
    %180 = vmatprep.subr.mxu0 0.0
    %181 = vmatpush2.msra.mxu0 0.0
    %182 = vmatprep.subr.mxu0 0.0
    %183 = vmatpush2.msra.mxu0 0.0
    %184 = vmatprep.subr.mxu0 0.0
    %185 = vmatpush2.msra.mxu0 0.0
    %186 = vmatprep.subr.mxu0 0.0
    %187 = vmatpush2.msra.mxu0 0.0
    %188 = vmatprep.subr.mxu0 0.0
    %189 = vmatpush2.msra.mxu0 0.0
    %190 = vmatprep.mubr.f32.mxu0 0.0
    %191 = vmatmul.mubr.f32.gmra.mxu0 %v124
    %v192 = vpop.f32.mrf.mxu0
    %v193 = vadd.f32 %v117, %v192
    %v194 = vpop.f32.mrf.mxu0
    %195 = vdwg.mxu0
    %v196 = vld [vmem:[#allocation2 + $0x38] sm:$0xff]
    %v197 = vadd.f32 %v193, %v196
    %v198 = vtanh.pop %v197
    %v199 = vmul.f32 %v198, %v198
    %v200 = vsub.f32 1.0, %v199
    %v201 = vld [vmem:[#allocation2 + $0x40] sm:$0xff]
    %v202 = vld [vmem:[#allocation2 + $0x48] sm:$0xff]
    %v203 = vld [vmem:[#allocation2 + $0x50] sm:$0xff]
    %v204 = vld [vmem:[#allocation2 + $0x58] sm:$0xff]
    %v205 = vld [vmem:[#allocation2 + $0x60] sm:$0xff]
    %v206 = vld [vmem:[#allocation2 + $0x68] sm:$0xff]
    %v207 = vld [vmem:[#allocation2 + $0x70] sm:$0xff]
    %v208 = vld [vmem:[#allocation2 + $0x78] sm:$0xff]
    %v209 = vld [vmem:[#allocation2 + $0x80] sm:$0xff]
    %vm210 = vcmask 523264
    %v212 = vsel %vm210, %v198, 0
    %214 = vmatprep.subr.mxu0 0.0
    %215 = vmatpush1.msra.mxu0 0.0
    %216 = vmatprep.subr.mxu0 0.0
    %217 = vmatpush1.msra.mxu0 0.0
    %218 = vmatprep.subr.mxu0 0.0
    %219 = vmatpush1.msra.mxu0 0.0
    %220 = vmatprep.subr.mxu0 0.0
    %221 = vmatpush1.msra.mxu0 0.0
    %222 = vmatprep.subr.mxu0 0.0
    %223 = vmatpush1.msra.mxu0 0.0
    %224 = vmatprep.subr.mxu0 0.0
    %225 = vmatpush1.msra.mxu0 0.0
    %226 = vmatprep.subr.mxu0 0.0
    %227 = vmatpush1.msra.mxu0 0.0
    %228 = vmatprep.subr.mxu0 0.0
    %229 = vmatpush1.msra.mxu0 0.0
    %230 = vmatprep.subr.mxu0 0.0
    %231 = vmatpush1.msra.mxu0 %v208
    %232 = vmatprep.subr.mxu0 0.0
    %233 = vmatpush1.msra.mxu0 %v207
    %234 = vmatprep.subr.mxu0 0.0
    %235 = vmatpush1.msra.mxu0 %v206
    %236 = vmatprep.subr.mxu0 0.0
    %237 = vmatpush1.msra.mxu0 %v205
    %238 = vmatprep.subr.mxu0 0.0
    %239 = vmatpush1.msra.mxu0 %v204
    %240 = vmatprep.subr.mxu0 0.0
    %241 = vmatpush1.msra.mxu0 %v203
    %242 = vmatprep.subr.mxu0 0.0
    %243 = vmatpush1.msra.mxu0 %v202
    %244 = vmatprep.subr.mxu0 0.0
    %245 = vmatpush1.msra.mxu0 %v201
    %246 = vmatprep.subr.mxu0 0.0
    %247 = vmatpush2.msra.mxu0 0.0
    %248 = vmatprep.subr.mxu0 0.0
    %249 = vmatpush2.msra.mxu0 0.0
    %250 = vmatprep.subr.mxu0 0.0
    %251 = vmatpush2.msra.mxu0 0.0
    %252 = vmatprep.subr.mxu0 0.0
    %253 = vmatpush2.msra.mxu0 0.0
    %254 = vmatprep.subr.mxu0 0.0
    %255 = vmatpush2.msra.mxu0 0.0
    %256 = vmatprep.subr.mxu0 0.0
    %257 = vmatpush2.msra.mxu0 0.0
    %258 = vmatprep.subr.mxu0 0.0
    %259 = vmatpush2.msra.mxu0 0.0
    %260 = vmatprep.subr.mxu0 0.0
    %261 = vmatpush2.msra.mxu0 0.0
    %262 = vmatprep.subr.mxu0 0.0
    %263 = vmatpush2.msra.mxu0 0.0
    %264 = vmatprep.subr.mxu0 0.0
    %265 = vmatpush2.msra.mxu0 0.0
    %266 = vmatprep.subr.mxu0 0.0
    %267 = vmatpush2.msra.mxu0 0.0
    %268 = vmatprep.subr.mxu0 0.0
    %269 = vmatpush2.msra.mxu0 0.0
    %270 = vmatprep.subr.mxu0 0.0
    %271 = vmatpush2.msra.mxu0 0.0
    %272 = vmatprep.subr.mxu0 0.0
    %273 = vmatpush2.msra.mxu0 0.0
    %274 = vmatprep.subr.mxu0 0.0
    %275 = vmatpush2.msra.mxu0 0.0
    %276 = vmatprep.subr.mxu0 0.0
    %277 = vmatpush2.msra.mxu0 0.0
    %278 = vmatprep.mubr.f32.mxu0 0.0
    %279 = vmatmul.mubr.f32.gmra.mxu0 %v212
    %v280 = vpop.f32.mrf.mxu0
    %v281 = vadd.f32 %v209, %v280
    %v282 = vpop.f32.mrf.mxu0
    %283 = vdwg.mxu0
    %v284 = vmul.f32 %v200, %v281
    %v285 = vld [vmem:[#allocation2 + $0x88] sm:$0xff]
    %v286 = vld [vmem:[#allocation2 + $0x90] sm:$0xff]
    %v287 = vld [vmem:[#allocation2 + $0x98] sm:$0xff]
    %v288 = vld [vmem:[#allocation2 + $0xa0] sm:$0xff]
    %v290 = vsel %vm122, %v284, 0
    %292 = vmatprep.subr.mxu0 0.0
    %293 = vmatpush1.msra.mxu0 0.0
    %294 = vmatprep.subr.mxu0 0.0
    %295 = vmatpush1.msra.mxu0 0.0
    %296 = vmatprep.subr.mxu0 0.0
    %297 = vmatpush1.msra.mxu0 0.0
    %298 = vmatprep.subr.mxu0 0.0
    %299 = vmatpush1.msra.mxu0 0.0
    %300 = vmatprep.subr.mxu0 0.0
    %301 = vmatpush1.msra.mxu0 0.0
    %302 = vmatprep.subr.mxu0 0.0
    %303 = vmatpush1.msra.mxu0 0.0
    %304 = vmatprep.subr.mxu0 0.0
    %305 = vmatpush1.msra.mxu0 0.0
    %306 = vmatprep.subr.mxu0 0.0
    %307 = vmatpush1.msra.mxu0 0.0
    %308 = vmatprep.subr.mxu0 0.0
    %309 = vmatpush1.msra.mxu0 0.0
    %310 = vmatprep.subr.mxu0 0.0
    %311 = vmatpush1.msra.mxu0 0.0
    %312 = vmatprep.subr.mxu0 0.0
    %313 = vmatpush1.msra.mxu0 0.0
    %314 = vmatprep.subr.mxu0 0.0
    %315 = vmatpush1.msra.mxu0 0.0
    %316 = vmatprep.subr.mxu0 0.0
    %317 = vmatpush1.msra.mxu0 %v288
    %318 = vmatprep.subr.mxu0 0.0
    %319 = vmatpush1.msra.mxu0 %v287
    %320 = vmatprep.subr.mxu0 0.0
    %321 = vmatpush1.msra.mxu0 %v286
    %322 = vmatprep.subr.mxu0 0.0
    %323 = vmatpush1.msra.mxu0 %v285
    %324 = vmatprep.subr.mxu0 0.0
    %325 = vmatpush2.msra.mxu0 0.0
    %326 = vmatprep.subr.mxu0 0.0
    %327 = vmatpush2.msra.mxu0 0.0
    %328 = vmatprep.subr.mxu0 0.0
    %329 = vmatpush2.msra.mxu0 0.0
    %330 = vmatprep.subr.mxu0 0.0
    %331 = vmatpush2.msra.mxu0 0.0
    %332 = vmatprep.subr.mxu0 0.0
    %333 = vmatpush2.msra.mxu0 0.0
    %334 = vmatprep.subr.mxu0 0.0
    %335 = vmatpush2.msra.mxu0 0.0
    %336 = vmatprep.subr.mxu0 0.0
    %337 = vmatpush2.msra.mxu0 0.0
    %338 = vmatprep.subr.mxu0 0.0
    %339 = vmatpush2.msra.mxu0 0.0
    %340 = vmatprep.subr.mxu0 0.0
    %341 = vmatpush2.msra.mxu0 0.0
    %342 = vmatprep.subr.mxu0 0.0
    %343 = vmatpush2.msra.mxu0 0.0
    %344 = vmatprep.subr.mxu0 0.0
    %345 = vmatpush2.msra.mxu0 0.0
    %346 = vmatprep.subr.mxu0 0.0
    %347 = vmatpush2.msra.mxu0 0.0
    %348 = vmatprep.subr.mxu0 0.0
    %349 = vmatpush2.msra.mxu0 0.0
    %350 = vmatprep.subr.mxu0 0.0
    %351 = vmatpush2.msra.mxu0 0.0
    %352 = vmatprep.subr.mxu0 0.0
    %353 = vmatpush2.msra.mxu0 0.0
    %354 = vmatprep.subr.mxu0 0.0
    %355 = vmatpush2.msra.mxu0 0.0
    %356 = vmatprep.mubr.f32.mxu0 0.0
    %357 = vmatmul.mubr.f32.gmra.mxu0 %v290
    %v358 = vpop.f32.mrf.mxu0
    %v359 = vadd.f32 0.0, %v358
    %v360 = vpop.f32.mrf.mxu0
    %361 = vdwg.mxu0
    %362 = vst.msk [vmem:[%s3] sm:$0xff] %vm32, %v359
    // Predicated region
    $region18: #{encoded_dynamics.1} parent=1 // pred_check
      _
    $region19: #{encoded_dynamics.1} parent=1 // pred_check_branch
      %364 = sbr.rel (0) target = $region21
    $region20: #{encoded_dynamics.1} parent=1 // pred_region
      _
    $region21: #{encoded_dynamics.1} parent=1 // pred_fallthru
      _
    // Predicated region
    $region22: #{encoded_dynamics.1} parent=1 // pred_check
      _
    $region23: #{encoded_dynamics.1} parent=1 // pred_check_branch
      %366 = sbr.rel (0) target = $region25
    $region24: #{encoded_dynamics.1} parent=1 // pred_region
      _
    $region25: #{encoded_dynamics.1} parent=1 // pred_fallthru
      _
    %367 = vsyncpa [#allocation3], 1

</llo_original>
